<compile_context>
chip_gen: v7x
topology: tpu7x:2x2x1
jax: 0.10.0
libtpu: 0.0.40
codegen_flags: <defaults>
</compile_context>

<pallas_src>
import functools

import jax
import jax.numpy as jnp
from jax import lax
from jax.experimental import pallas as pl
from jax.experimental.pallas import tpu as pltpu


def _image_plane_kernel(pts_ref, mat_ref, img_ref, out_ref, *,
                        size, H, W_img, W_pad, approx_recip):
    """One (plane, P-tile) grid step: project points into this plane and
    bilinearly sample its image (grid_sample: bilinear/zeros/align_corners=False).

    pts_ref : (4, TP)          homogeneous points, P on the lane axis   (f32)
    mat_ref : (1, 3, 4)        this plane's K @ pose_inv                (f32)
    img_ref : (1, C, H*W_pad)  this plane's image, flat & lane-dense    (f32/bf16)
    out_ref : (1, C, TP)       sampled features                         (f32)
    """
    pts = pts_ref[...]                                              # (4, TP)
    m = mat_ref[0]                                                  # (3, 4)
    img = img_ref[0]                                                # (C, H*W_pad)
    tp = pts.shape[1]

    # ps = (K @ pose_inv) @ points^T  (tiny MXU op; negligible next to sampling)
    proj = jnp.dot(m, pts, preferred_element_type=jnp.float32)      # (3, TP)
    px, py, pz = proj[0:1], proj[1:2], proj[2:3]

    # pixels = clamp((ps / ps[2]) / size, 0, 1) * 2 - 1  (one reciprocal, 2 muls)
    denom = pz * size
    inv = pl.reciprocal(denom, approx=True) if approx_recip else 1.0 / denom
    gx = jnp.clip(px * inv, 0.0, 1.0) * 2.0 - 1.0                   # width coord
    gy = jnp.clip(py * inv, 0.0, 1.0) * 2.0 - 1.0                   # height coord

    # torch.grid_sample unnormalisation (align_corners=False).
    ix = ((gx + 1.0) * W_img - 1.0) * 0.5                           # (1, TP)
    iy = ((gy + 1.0) * H - 1.0) * 0.5
    x0f = jnp.floor(ix)
    y0f = jnp.floor(iy)
    fx = ix - x0f
    fy = iy - y0f
    x0 = x0f.astype(jnp.int32)
    y0 = y0f.astype(jnp.int32)
    x1 = x0 + 1
    y1 = y0 + 1

    # Separable one-hot bilinear weights (f32 VPU math, O((H+W)*TP)).
    # Out-of-range corner indices (x0=-1, x1=W_img, y0=-1, y1=H) never hit the
    # iota (and padded image columns [W_img, W_pad) are zero), so the
    # padding_mode='zeros' weights are exactly 0 without explicit masks.
    col_iota = lax.broadcasted_iota(jnp.int32, (W_pad, tp), 0)      # (W_pad, TP)
    row_iota = lax.broadcasted_iota(jnp.int32, (H, tp), 0)          # (H, TP)
    wx = (jnp.where(col_iota == x0, 1.0 - fx, 0.0)
          + jnp.where(col_iota == x1, fx, 0.0))                     # (W_pad, TP)
    wy = (jnp.where(row_iota == y0, 1.0 - fy, 0.0)
          + jnp.where(row_iota == y1, fy, 0.0))                     # (H, TP)

    # Outer product -> flat sampling matrix: ONE multiply over HW x TP elements
    # (the reshape is a free sublane collapse because W_pad % 8 == 0).
    wxy = (wy[:, None, :] * wx[None, :, :]).reshape(H * W_pad, tp)  # (HW, TP)

    # Fused bilinear gather on the MXU: (C, HW) @ (HW, TP) -> (C, TP), f32 acc.
    # TODO(synk): for large images (H*W >~ 4K) this O(HW)-per-point matmul and
    # the (HW, TP) weight slab stop fitting VMEM / the roofline; switch to a
    # windowed / DMA-gather formulation there.
    feat = jnp.dot(img, wxy.astype(img.dtype),
                   preferred_element_type=jnp.float32)              # (C, TP)
    out_ref[0] = feat.astype(out_ref.dtype)


def build_image_plane_params(focal, poses, images, count):
    """Mirror of ImagePlane.__init__ (pure JAX glue)."""
    n = min(count, poses.shape[0])
    flip = jnp.array([[-1.0, 0, 0, 0],
                      [0, 1.0, 0, 0],
                      [0, 0, 1.0, 0],
                      [0, 0, 0, 1.0]], jnp.float32)
    M = poses[:n] @ flip                                    # (n, 4, 4)
    centroids = M[:, 0:3, 3]                                # (n, 3)
    pose_matrices = jnp.linalg.inv(M)[:, 0:3, :]            # (n, 3, 4)
    H = images.shape[1]
    size = float(H)
    K = jnp.array([[focal, 0.0, 0.5 * H],
                   [0.0, focal, 0.5 * H],
                   [0.0, 0.0, 1.0]], jnp.float32)
    K_matrices = jnp.broadcast_to(K, (n, 3, 3))
    image_plane = jnp.transpose(images[:n], (0, 3, 1, 2))   # (n, C, H, W) NCHW
    return K_matrices, pose_matrices, image_plane, centroids, size


def _pick_tile_p(P_pad, HWp, N):
    """Keep the (HWp, TILE_P) f32 intermediates well under scoped VMEM and
    guarantee >= 2 grid steps for megacore even when N == 1."""
    tile = 256 if (HWp < 1024 and P_pad % 256 == 0) else 128
    if N == 1 and tile >= P_pad and P_pad >= 256:
        tile = 128
    return min(tile, P_pad)


def image_plane_forward(points, K_matrices, pose_matrices, image_plane,
                        centroids, size, *, sample_dtype=jnp.bfloat16):
    """Forward pass of ImagePlane. Returns (P, N*C + 3*N) float32.

    sample_dtype: dtype of the MXU operands (image & sampling weights).
      bf16 (default) halves image VMEM/DMA and doubles MXU throughput on
      v5e/v6e; use float32 for bit-faithful sampling.
    """
    if points.ndim == 3 and points.shape[0] == 1:
        points = points[0]
    P = points.shape[0]
    N, C, H, W = image_plane.shape

    # ---- layouts -----------------------------------------------------------
    # Points: lane-dense (4, P_pad), P padded to a multiple of 128 (edge pad
    # keeps the padding finite so no inf/NaN leak into the padded columns).
    P_pad = max(128, ((P + 127) // 128) * 128)
    pts_T = jnp.concatenate([points.astype(jnp.float32).T,
                             jnp.ones((1, P), jnp.float32)], axis=0)     # (4, P)
    pts_T = jnp.pad(pts_T, ((0, 0), (0, P_pad - P)), mode="edge")        # (4, P_pad)

    # Per-plane projection matrices M = K @ pose_inv, kept 3-D (N, 3, 4).
    mats = jnp.einsum("nij,njk->nik", K_matrices,
                      pose_matrices).astype(jnp.float32)                 # (N, 3, 4)

    # Images: pad W to a multiple of 8 with zeros (free weight reshape in the
    # kernel, zero-padding is correctness-neutral) and flatten to (N, C, HWp).
    W_pad = ((W + 7) // 8) * 8
    img = image_plane.astype(jnp.float32)
    if W_pad != W:
        img = jnp.pad(img, ((0, 0), (0, 0), (0, 0), (0, W_pad - W)))
    HWp = H * W_pad
    img_flat = img.reshape(N, C, HWp).astype(sample_dtype)               # (N, C, HWp)

    TILE_P = _pick_tile_p(P_pad, HWp, N)
    approx_recip = (sample_dtype == jnp.bfloat16)

    # ---- compiler params ---------------------------------------------------
    itemsize = jnp.dtype(sample_dtype).itemsize
    vmem_est = (2 * 4 * TILE_P * 4              # points double buffer
                + 2 * C * HWp * itemsize        # one plane's image, double buffered
                + 2 * C * TILE_P * 4            # output double buffer
                + 4 * HWp * TILE_P * 4          # wxy + broadcast temporaries (f32)
                + (1 << 20))
    cp_kwargs = dict(dimension_semantics=("parallel", "parallel"))
    if vmem_est > (16 << 20):
        cp_kwargs["vmem_limit_bytes"] = int(min(max(vmem_est, 32 << 20), 56 << 20))

    kernel = functools.partial(_image_plane_kernel, size=float(size), H=H,
                               W_img=W, W_pad=W_pad, approx_recip=approx_recip)

    # ---- pallas call -------------------------------------------------------
    # Grid: planes outer (image block re-fetched only when the plane changes),
    # P tiles inner.  All output blocks are independent -> both axes parallel.
    out = pl.pallas_call(
        kernel,
        out_shape=jax.ShapeDtypeStruct((N, C, P_pad), jnp.float32),
        grid_spec=pltpu.PrefetchScalarGridSpec(
            num_scalar_prefetch=0,
            grid=(N, P_pad // TILE_P),
            in_specs=[
                pl.BlockSpec((4, TILE_P), lambda n, i: (0, i)),      # points tile
                pl.BlockSpec((1, 3, 4), lambda n, i: (n, 0, 0)),     # this plane's matrix
                pl.BlockSpec((1, C, HWp), lambda n, i: (n, 0, 0)),   # this plane's image
            ],
            out_specs=pl.BlockSpec((1, C, TILE_P), lambda n, i: (n, 0, i)),
        ),
        compiler_params=pltpu.CompilerParams(**cp_kwargs),
    )(pts_T, mats, img_flat)                                  # (N, C, P_pad)

    # (N, C, P) -> (P, N*C), column = n*C + c  (layout plumbing in the wrapper).
    feats = jnp.transpose(out[:, :, :P], (2, 0, 1)).reshape(P, N * C)
    cposes = jnp.broadcast_to(centroids.reshape(-1)[None, :], (P, 3 * N))
    return jnp.concatenate([feats, cposes], axis=1)           # (P, N*C + 3N)


def _reference_forward(points, K_matrices, pose_matrices, image_plane,
                       centroids, size):
    """Pure-JAX reference (same math as the PyTorch module) for self-check."""
    if points.ndim == 3 and points.shape[0] == 1:
        points = points[0]
    P = points.shape[0]
    N, C, H, W = image_plane.shape
    pts_h = jnp.concatenate([points.astype(jnp.float32),
                             jnp.ones((P, 1), jnp.float32)], axis=1)      # (P, 4)
    M = jnp.einsum("nij,njk->nik", K_matrices, pose_matrices)             # (N, 3, 4)
    ps = jnp.einsum("nij,pj->nip", M, pts_h)                              # (N, 3, P)
    pix = ps[:, 0:2, :] / ps[:, 2:3, :] / size
    pix = jnp.clip(pix, 0.0, 1.0) * 2.0 - 1.0
    gx, gy = pix[:, 0, :], pix[:, 1, :]                                   # (N, P)
    ix = ((gx + 1.0) * W - 1.0) * 0.5
    iy = ((gy + 1.0) * H - 1.0) * 0.5
    x0 = jnp.floor(ix).astype(jnp.int32)
    y0 = jnp.floor(iy).astype(jnp.int32)
    fx = ix - x0
    fy = iy - y0

    def gather(yy, xx):
        valid = (xx >= 0) & (xx < W) & (yy >= 0) & (yy < H)
        yc = jnp.clip(yy, 0, H - 1)
        xc = jnp.clip(xx, 0, W - 1)
        v = jax.vmap(lambda im, y, x: im[:, y, x])(image_plane, yc, xc)    # (N, C, P)
        return v * valid[:, None, :]

    v00, v01 = gather(y0, x0), gather(y0, x0 + 1)
    v10, v11 = gather(y0 + 1, x0), gather(y0 + 1, x0 + 1)
    fxn, fyn = fx[:, None, :], fy[:, None, :]
    feat = (v00 * (1 - fxn) * (1 - fyn) + v01 * fxn * (1 - fyn)
            + v10 * (1 - fxn) * fyn + v11 * fxn * fyn)                    # (N, C, P)
    feats = jnp.transpose(feat, (2, 0, 1)).reshape(P, N * C)
    cposes = jnp.broadcast_to(centroids.reshape(-1)[None, :], (P, 3 * N))
    return jnp.concatenate([feats, cposes], axis=1)


if __name__ == "__main__":
    key = jax.random.PRNGKey(0)
    k_t, k_img, k_pts = jax.random.split(key, 3)

    count = 4        # number of image planes
    H = W = 16       # image spatial size
    C = 3            # image channels
    P = 64           # number of query points
    focal = 20.0

    # Deterministic camera-to-world poses: identity rotation, small translations.
    t = jax.random.normal(k_t, (count, 3), jnp.float32) * 0.1
    poses = jnp.tile(jnp.eye(4, dtype=jnp.float32)[None], (count, 1, 1))
    poses = poses.at[:, 0:3, 3].set(t)

    images = jax.random.uniform(k_img, (count, H, W, C), jnp.float32)
    points = (jax.random.normal(k_pts, (P, 3), jnp.float32) * 0.5
              + jnp.array([0.0, 0.0, 3.0], jnp.float32))

    Kms, pose_m, img_plane, centroids, size = build_image_plane_params(
        focal, poses, images, count)

    ref = _reference_forward(points, Kms, pose_m, img_plane, centroids, size)

    # Strict path: f32 MXU operands + exact reciprocal (bit-faithful sampling).
    out_f32 = image_plane_forward(points, Kms, pose_m, img_plane, centroids,
                                  size, sample_dtype=jnp.float32)
    jax.block_until_ready(out_f32)
    assert out_f32.shape == (P, count * C + 3 * count), out_f32.shape
    err_f32 = float(jnp.max(jnp.abs(out_f32 - ref)))
    assert err_f32 < 1e-3, err_f32

    # Default (perf) path: bf16 image/weight MXU operands, f32 accumulation,
    # approximate EUP reciprocal -- looser tolerance per the perf review.
    out_bf16 = image_plane_forward(points, Kms, pose_m, img_plane, centroids,
                                   size)
    jax.block_until_ready(out_bf16)
    err_bf16 = float(jnp.max(jnp.abs(out_bf16 - ref)))
    assert err_bf16 < 3e-2, err_bf16

    # TODO(synk): the dead `use_xyz=True` branch (positional embedders) is not
    # exercised by the reference forward and is not implemented.
    print("KERNEL_OK")
</pallas_src>

<mosaic_0001>
module attributes {stable_mosaic.version = 11 : i64} {
  func.func @_image_plane_kernel(%arg0: i32, %arg1: i32, %arg2: memref<4x128xf32, #tpu.memory_space<vmem>>, %arg3: memref<1x3x4xf32, #tpu.memory_space<vmem>>, %arg4: memref<1x3x256xf32, #tpu.memory_space<vmem>>, %arg5: memref<1x3x128xf32, #tpu.memory_space<vmem>>) attributes {dimension_semantics = [#tpu.dimension_semantics<parallel>, #tpu.dimension_semantics<parallel>], iteration_bounds = array<i64: 4, 1>, scalar_prefetch = 0 : i64, scratch_operands = 0 : i64, tpu.core_type = #tpu.core_type<tc>, window_params = [{transform_indices = @transform_0, window_bounds = array<i64: 4, 128>}, {transform_indices = @transform_1, window_bounds = array<i64: 1, 3, 4>}, {transform_indices = @transform_2, window_bounds = array<i64: 1, 3, 256>}, {transform_indices = @transform_3, window_bounds = array<i64: 1, 3, 128>}]} {
    %c0 = arith.constant 0 : index
    %c0_0 = arith.constant 0 : index
    %0 = vector.load %arg2[%c0, %c0_0] : memref<4x128xf32, #tpu.memory_space<vmem>>, vector<4x128xf32>
    %c0_1 = arith.constant 0 : index
    %c0_2 = arith.constant 0 : index
    %c0_3 = arith.constant 0 : index
    %1 = vector.load %arg3[%c0_1, %c0_2, %c0_3] : memref<1x3x4xf32, #tpu.memory_space<vmem>>, vector<1x3x4xf32>
    %2 = vector.shape_cast %1 : vector<1x3x4xf32> to vector<3x4xf32>
    %c0_4 = arith.constant 0 : index
    %c0_5 = arith.constant 0 : index
    %c0_6 = arith.constant 0 : index
    %3 = vector.load %arg4[%c0_4, %c0_5, %c0_6] : memref<1x3x256xf32, #tpu.memory_space<vmem>>, vector<1x3x256xf32>
    %4 = vector.shape_cast %3 : vector<1x3x256xf32> to vector<3x256xf32>
    %cst = arith.constant dense<0.000000e+00> : vector<3x128xf32>
    %5 = tpu.matmul %2, %0, %cst {dimension_numbers = #tpu.dot_dimension_numbers<[1], [0], [0], [1], [0, 0, 1, 1], [], []>} : vector<3x4xf32>, vector<4x128xf32>, vector<3x128xf32> -> vector<3x128xf32>
    %6 = vector.extract_strided_slice %5 {offsets = [0, 0], sizes = [1, 128], strides = [1, 1]} : vector<3x128xf32> to vector<1x128xf32>
    %7 = vector.extract_strided_slice %5 {offsets = [1, 0], sizes = [1, 128], strides = [1, 1]} : vector<3x128xf32> to vector<1x128xf32>
    %8 = vector.extract_strided_slice %5 {offsets = [2, 0], sizes = [1, 128], strides = [1, 1]} : vector<3x128xf32> to vector<1x128xf32>
    %cst_7 = arith.constant 1.600000e+01 : f32
    %9 = vector.broadcast %cst_7 : f32 to vector<1x128xf32>
    %10 = arith.mulf %8, %9 : vector<1x128xf32>
    %cst_8 = arith.constant 1.000000e+00 : f32
    %11 = vector.broadcast %cst_8 : f32 to vector<1x128xf32>
    %12 = arith.divf %11, %10 : vector<1x128xf32>
    %13 = arith.mulf %6, %12 : vector<1x128xf32>
    %cst_9 = arith.constant 0.000000e+00 : f32
    %cst_10 = arith.constant 1.000000e+00 : f32
    %14 = vector.broadcast %cst_9 : f32 to vector<1x128xf32>
    %15 = arith.maximumf %14, %13 : vector<1x128xf32>
    %16 = vector.broadcast %cst_10 : f32 to vector<1x128xf32>
    %17 = arith.minimumf %16, %15 : vector<1x128xf32>
    %cst_11 = arith.constant 2.000000e+00 : f32
    %18 = vector.broadcast %cst_11 : f32 to vector<1x128xf32>
    %19 = arith.mulf %17, %18 : vector<1x128xf32>
    %cst_12 = arith.constant 1.000000e+00 : f32
    %20 = vector.broadcast %cst_12 : f32 to vector<1x128xf32>
    %21 = arith.subf %19, %20 : vector<1x128xf32>
    %22 = arith.mulf %7, %12 : vector<1x128xf32>
    %cst_13 = arith.constant 0.000000e+00 : f32
    %cst_14 = arith.constant 1.000000e+00 : f32
    %23 = vector.broadcast %cst_13 : f32 to vector<1x128xf32>
    %24 = arith.maximumf %23, %22 : vector<1x128xf32>
    %25 = vector.broadcast %cst_14 : f32 to vector<1x128xf32>
    %26 = arith.minimumf %25, %24 : vector<1x128xf32>
    %cst_15 = arith.constant 2.000000e+00 : f32
    %27 = vector.broadcast %cst_15 : f32 to vector<1x128xf32>
    %28 = arith.mulf %26, %27 : vector<1x128xf32>
    %cst_16 = arith.constant 1.000000e+00 : f32
    %29 = vector.broadcast %cst_16 : f32 to vector<1x128xf32>
    %30 = arith.subf %28, %29 : vector<1x128xf32>
    %cst_17 = arith.constant 1.000000e+00 : f32
    %31 = vector.broadcast %cst_17 : f32 to vector<1x128xf32>
    %32 = arith.addf %21, %31 : vector<1x128xf32>
    %cst_18 = arith.constant 1.600000e+01 : f32
    %33 = vector.broadcast %cst_18 : f32 to vector<1x128xf32>
    %34 = arith.mulf %32, %33 : vector<1x128xf32>
    %cst_19 = arith.constant 1.000000e+00 : f32
    %35 = vector.broadcast %cst_19 : f32 to vector<1x128xf32>
    %36 = arith.subf %34, %35 : vector<1x128xf32>
    %cst_20 = arith.constant 5.000000e-01 : f32
    %37 = vector.broadcast %cst_20 : f32 to vector<1x128xf32>
    %38 = arith.mulf %36, %37 : vector<1x128xf32>
    %cst_21 = arith.constant 1.000000e+00 : f32
    %39 = vector.broadcast %cst_21 : f32 to vector<1x128xf32>
    %40 = arith.addf %30, %39 : vector<1x128xf32>
    %cst_22 = arith.constant 1.600000e+01 : f32
    %41 = vector.broadcast %cst_22 : f32 to vector<1x128xf32>
    %42 = arith.mulf %40, %41 : vector<1x128xf32>
    %cst_23 = arith.constant 1.000000e+00 : f32
    %43 = vector.broadcast %cst_23 : f32 to vector<1x128xf32>
    %44 = arith.subf %42, %43 : vector<1x128xf32>
    %cst_24 = arith.constant 5.000000e-01 : f32
    %45 = vector.broadcast %cst_24 : f32 to vector<1x128xf32>
    %46 = arith.mulf %44, %45 : vector<1x128xf32>
    %47 = math.floor %38 : vector<1x128xf32>
    %48 = math.floor %46 : vector<1x128xf32>
    %49 = arith.subf %38, %47 : vector<1x128xf32>
    %50 = arith.subf %46, %48 : vector<1x128xf32>
    %51 = arith.fptosi %47 : vector<1x128xf32> to vector<1x128xi32>
    %52 = arith.fptosi %48 : vector<1x128xf32> to vector<1x128xi32>
    %c1_i32 = arith.constant 1 : i32
    %53 = vector.broadcast %c1_i32 : i32 to vector<1x128xi32>
    %54 = arith.addi %51, %53 : vector<1x128xi32>
    %c1_i32_25 = arith.constant 1 : i32
    %55 = vector.broadcast %c1_i32_25 : i32 to vector<1x128xi32>
    %56 = arith.addi %52, %55 : vector<1x128xi32>
    %57 = tpu.iota {dimensions = array<i32: 0>} : vector<16x128xi32>
    %58 = tpu.iota {dimensions = array<i32: 0>} : vector<16x128xi32>
    %59 = vector.broadcast %51 : vector<1x128xi32> to vector<16x128xi32>
    %60 = arith.cmpi eq, %57, %59 : vector<16x128xi32>
    %cst_26 = arith.constant 1.000000e+00 : f32
    %61 = vector.broadcast %cst_26 : f32 to vector<1x128xf32>
    %62 = arith.subf %61, %49 : vector<1x128xf32>
    %cst_27 = arith.constant 0.000000e+00 : f32
    %63 = vector.shape_cast %62 : vector<1x128xf32> to vector<1x128xf32>
    %64 = vector.broadcast %63 : vector<1x128xf32> to vector<16x128xf32>
    %65 = vector.broadcast %cst_27 : f32 to vector<16x128xf32>
    %66 = arith.select %60, %64, %65 : vector<16x128xi1>, vector<16x128xf32>
    %67 = vector.broadcast %54 : vector<1x128xi32> to vector<16x128xi32>
    %68 = arith.cmpi eq, %57, %67 : vector<16x128xi32>
    %cst_28 = arith.constant 0.000000e+00 : f32
    %69 = vector.shape_cast %49 : vector<1x128xf32> to vector<1x128xf32>
    %70 = vector.broadcast %69 : vector<1x128xf32> to vector<16x128xf32>
    %71 = vector.broadcast %cst_28 : f32 to vector<16x128xf32>
    %72 = arith.select %68, %70, %71 : vector<16x128xi1>, vector<16x128xf32>
    %73 = arith.addf %66, %72 : vector<16x128xf32>
    %74 = vector.broadcast %52 : vector<1x128xi32> to vector<16x128xi32>
    %75 = arith.cmpi eq, %58, %74 : vector<16x128xi32>
    %cst_29 = arith.constant 1.000000e+00 : f32
    %76 = vector.broadcast %cst_29 : f32 to vector<1x128xf32>
    %77 = arith.subf %76, %50 : vector<1x128xf32>
    %cst_30 = arith.constant 0.000000e+00 : f32
    %78 = vector.shape_cast %77 : vector<1x128xf32> to vector<1x128xf32>
    %79 = vector.broadcast %78 : vector<1x128xf32> to vector<16x128xf32>
    %80 = vector.broadcast %cst_30 : f32 to vector<16x128xf32>
    %81 = arith.select %75, %79, %80 : vector<16x128xi1>, vector<16x128xf32>
    %82 = vector.broadcast %56 : vector<1x128xi32> to vector<16x128xi32>
    %83 = arith.cmpi eq, %58, %82 : vector<16x128xi32>
    %cst_31 = arith.constant 0.000000e+00 : f32
    %84 = vector.shape_cast %50 : vector<1x128xf32> to vector<1x128xf32>
    %85 = vector.broadcast %84 : vector<1x128xf32> to vector<16x128xf32>
    %86 = vector.broadcast %cst_31 : f32 to vector<16x128xf32>
    %87 = arith.select %83, %85, %86 : vector<16x128xi1>, vector<16x128xf32>
    %88 = arith.addf %81, %87 : vector<16x128xf32>
    %89 = vector.shape_cast %88 : vector<16x128xf32> to vector<16x1x128xf32>
    %90 = vector.shape_cast %73 : vector<16x128xf32> to vector<1x16x128xf32>
    %91 = vector.broadcast %89 : vector<16x1x128xf32> to vector<16x16x128xf32>
    %92 = vector.broadcast %90 : vector<1x16x128xf32> to vector<16x16x128xf32>
    %93 = arith.mulf %91, %92 : vector<16x16x128xf32>
    %94 = vector.shape_cast %93 : vector<16x16x128xf32> to vector<256x128xf32>
    %cst_32 = arith.constant dense<0.000000e+00> : vector<3x128xf32>
    %95 = tpu.matmul %4, %94, %cst_32 {dimension_numbers = #tpu.dot_dimension_numbers<[1], [0], [0], [1], [0, 0, 1, 1], [], []>} : vector<3x256xf32>, vector<256x128xf32>, vector<3x128xf32> -> vector<3x128xf32>
    %c0_33 = arith.constant 0 : index
    %c0_34 = arith.constant 0 : index
    %c0_35 = arith.constant 0 : index
    %96 = vector.load %arg5[%c0_33, %c0_34, %c0_35] : memref<1x3x128xf32, #tpu.memory_space<vmem>>, vector<1x3x128xf32>
    %97 = vector.shape_cast %96 : vector<1x3x128xf32> to vector<3x128xf32>
    %98 = vector.shape_cast %95 : vector<3x128xf32> to vector<1x3x128xf32>
    tpu.vector_store %arg5[%c0_33, %c0_34, %c0_35], %98 {strides = array<i32>} : memref<1x3x128xf32, #tpu.memory_space<vmem>>, vector<1x3x128xf32>,
    return
  }
  func.func @transform_0(%arg0: i32, %arg1: i32) -> (i32, i32) {
    %c0_i32 = arith.constant 0 : i32
    %c0_i32_0 = arith.constant 0 : i32
    return %c0_i32, %arg1 : i32, i32
  }
  func.func @transform_1(%arg0: i32, %arg1: i32) -> (i32, i32, i32) {
    %c0_i32 = arith.constant 0 : i32
    %c0_i32_0 = arith.constant 0 : i32
    %c0_i32_1 = arith.constant 0 : i32
    return %arg0, %c0_i32, %c0_i32_0 : i32, i32, i32
  }
  func.func @transform_2(%arg0: i32, %arg1: i32) -> (i32, i32, i32) {
    %c0_i32 = arith.constant 0 : i32
    %c0_i32_0 = arith.constant 0 : i32
    %c0_i32_1 = arith.constant 0 : i32
    return %arg0, %c0_i32, %c0_i32_0 : i32, i32, i32
  }
  func.func @transform_3(%arg0: i32, %arg1: i32) -> (i32, i32, i32) {
    %c0_i32 = arith.constant 0 : i32
    %c0_i32_0 = arith.constant 0 : i32
    return %arg0, %c0_i32, %arg1 : i32, i32, i32
  }
}

</mosaic_0001>

<llo_original>
// kernel: tpu_custom_call.1
$region0: #{tpu_custom_call.1}
  #allocation0 [shape = 'u32[]', space=smem, size = 0x4, offset = 0x4, fixed_abs, tag = 'smem constant byte address 0x4 - core index']
  #allocation1 [shape = 'u32[144,128]{1,0:T(1,128)}', space=vmem, size = 0x12000, scoped, tag = 'internal scratch']
  %s0 = inlined_call_operand.vmem [shape: f32[4,128], index: 0, kind: input, shape index: {}]
  %s1 = inlined_call_operand.vmem [shape: f32[4,3,4], index: 1, kind: input, shape index: {}]
  %s2 = inlined_call_operand.vmem [shape: f32[4,3,256], index: 2, kind: input, shape index: {}]
  %s3 = inlined_call_operand.vmem [shape: f32[4,3,128], index: 3, kind: output, shape index: {}]
  %s4 = sld [smem:[#allocation0]]
  $region45: #{tpu_custom_call.1} parent=0
    _
  %s6 = ssub.s32 1, %s4
  %s7 = scalar_select 0, %s6, %s4
  loop: start=0, step=1, limit=6
  $region2: #{tpu_custom_call.1} parent=0 // loop_pre_header
    _
  $region3: #{tpu_custom_call.1} parent=0 // loop_header
    %s9 = sphi 0, %s13
    %p10 = scmp.ge.s32.totalorder %s9, 6
    %s16 = sphi 0, %s28
    %s17 = sphi 0, %s24
    %s18 = sphi 0, %s16
    %s19 = sphi 0, %s17
    %s20 = sphi 0, %s18
    %s21 = sphi 0, %s19
    %s31 = sphi 0, %s33
    %s34 = sphi 0, %s31
    %s35 = sphi 0, %s34
    %s51 = sphi 0, %s35
    %s57 = sphi 0, %s59
    %s60 = sphi 0, %s57
    %s61 = sphi 0, %s60
    %s77 = sphi 0, %s61
    %s83 = sphi 0, %s85
    %s86 = sphi 0, %s83
    %s87 = sphi 0, %s86
    %s103 = sphi 0, %s87
    %s111 = sphi 0, %s113
    %s114 = sphi 0, %s111
    %s115 = sphi 0, %s114
    %s131 = sphi 0, %s115
  $region4: #{tpu_custom_call.1} parent=0 // loop_header_branch
    %12 = sbr.rel (%p10) target = $region8
  $region5: #{tpu_custom_call.1} parent=0 // loop_body
    %s14 = ssub.s32 %s9, 1
    %s15 = ssub.s32 %s9, 2
    %s22 = sadd.s32 1, %s17
    %p23 = scmp.ge.s32.totalorder %s22, 1
    %s24 = scalar_select %p23, 0, %s22
    %s25 = sadd.s32 1, %s16
    %s26 = scalar_select %p23, %s25, %s16
    %p27 = scmp.ge.s32.totalorder %s26, 4
    %s28 = scalar_select %p27, 0, %s26
    %s29 = ssub.s32 %s17, %s24
    %p30 = scmp.eq.s32.totalorder %s29, 0
    %s32 = sadd.s32 %s31, 1
    %s33 = scalar_select %p30, %s31, %s32
    %p36 = pneg %p30
    %p37 = scmp.eq.s32.totalorder %s9, 3
    %p38 = por %p36, %p37
    %p39 = scmp.ne.s32.totalorder %s31, %s34
    %p40 = scmp.eq.s32.totalorder %s9, 0
    %p41 = por %p39, %p40
    %p42 = scmp.ne.s32.totalorder %s31, %s34
    %p43 = scmp.eq.s32.totalorder %s14, 3
    %p44 = por %p42, %p43
    %p45 = scmp.ne.s32.totalorder %s34, %s35
    %p46 = scmp.eq.s32.totalorder %s14, 0
    %p47 = por %p45, %p46
    %p48 = scmp.ne.s32.totalorder %s34, %s35
    %p49 = scmp.eq.s32.totalorder %s15, 3
    %p50 = por %p48, %p49
    %p52 = scmp.ne.s32.totalorder %s35, %s51
    %p53 = scmp.eq.s32.totalorder %s15, 0
    %p54 = por %p52, %p53
    %s55 = ssub.s32 %s16, %s28
    %p56 = scmp.eq.s32.totalorder %s55, 0
    %s58 = sadd.s32 %s57, 1
    %s59 = scalar_select %p56, %s57, %s58
    %p62 = pneg %p56
    %p63 = scmp.eq.s32.totalorder %s9, 3
    %p64 = por %p62, %p63
    %p65 = scmp.ne.s32.totalorder %s57, %s60
    %p66 = scmp.eq.s32.totalorder %s9, 0
    %p67 = por %p65, %p66
    %p68 = scmp.ne.s32.totalorder %s57, %s60
    %p69 = scmp.eq.s32.totalorder %s14, 3
    %p70 = por %p68, %p69
    %p71 = scmp.ne.s32.totalorder %s60, %s61
    %p72 = scmp.eq.s32.totalorder %s14, 0
    %p73 = por %p71, %p72
    %p74 = scmp.ne.s32.totalorder %s60, %s61
    %p75 = scmp.eq.s32.totalorder %s15, 3
    %p76 = por %p74, %p75
    %p78 = scmp.ne.s32.totalorder %s61, %s77
    %p79 = scmp.eq.s32.totalorder %s15, 0
    %p80 = por %p78, %p79
    %s81 = ssub.s32 %s16, %s28
    %p82 = scmp.eq.s32.totalorder %s81, 0
    %s84 = sadd.s32 %s83, 1
    %s85 = scalar_select %p82, %s83, %s84
    %p88 = pneg %p82
    %p89 = scmp.eq.s32.totalorder %s9, 3
    %p90 = por %p88, %p89
    %p91 = scmp.ne.s32.totalorder %s83, %s86
    %p92 = scmp.eq.s32.totalorder %s9, 0
    %p93 = por %p91, %p92
    %p94 = scmp.ne.s32.totalorder %s83, %s86
    %p95 = scmp.eq.s32.totalorder %s14, 3
    %p96 = por %p94, %p95
    %p97 = scmp.ne.s32.totalorder %s86, %s87
    %p98 = scmp.eq.s32.totalorder %s14, 0
    %p99 = por %p97, %p98
    %p100 = scmp.ne.s32.totalorder %s86, %s87
    %p101 = scmp.eq.s32.totalorder %s15, 3
    %p102 = por %p100, %p101
    %p104 = scmp.ne.s32.totalorder %s87, %s103
    %p105 = scmp.eq.s32.totalorder %s15, 0
    %p106 = por %p104, %p105
    %s107 = ssub.s32 %s16, %s28
    %s108 = ssub.s32 %s17, %s24
    %s109 = sor.u32 %s107, %s108
    %p110 = scmp.eq.s32.totalorder %s109, 0
    %s112 = sadd.s32 %s111, 1
    %s113 = scalar_select %p110, %s111, %s112
    %p116 = pneg %p110
    %p117 = scmp.eq.s32.totalorder %s9, 3
    %p118 = por %p116, %p117
    %p119 = scmp.ne.s32.totalorder %s111, %s114
    %p120 = scmp.eq.s32.totalorder %s9, 0
    %p121 = por %p119, %p120
    %p122 = scmp.ne.s32.totalorder %s111, %s114
    %p123 = scmp.eq.s32.totalorder %s14, 3
    %p124 = por %p122, %p123
    %p125 = scmp.ne.s32.totalorder %s114, %s115
    %p126 = scmp.eq.s32.totalorder %s14, 0
    %p127 = por %p125, %p126
    %p128 = scmp.ne.s32.totalorder %s114, %s115
    %p129 = scmp.eq.s32.totalorder %s15, 3
    %p130 = por %p128, %p129
    %p132 = scmp.ne.s32.totalorder %s115, %s131
    %p133 = scmp.eq.s32.totalorder %s15, 0
    %p134 = por %p132, %p133
    %p135 = scmp.le.s32.totalorder 1, %s9
    %p136 = scmp.lt.s32.totalorder %s9, 5
    %p137 = pnand %p135, %p136
    %p138 = pneg %p137
    // Predicated region
    $region9: #{tpu_custom_call.1} parent=5 // pred_check
      _
    $region10: #{tpu_custom_call.1} parent=5 // pred_check_branch
      %140 = sbr.rel (%p137) target = $region12
    $region11: #{tpu_custom_call.1} parent=5 // pred_region
      %s141 = ssub.s32 %s9, 1
      // Predicated region
      $region13: #{tpu_custom_call.1} parent=11 // pred_check
        %p142 = pneg %p47
      $region14: #{tpu_custom_call.1} parent=11 // pred_check_branch
        %144 = sbr.rel (%p142) target = $region16
      $region15: #{tpu_custom_call.1} parent=11 // pred_region
        %p145 = scmp.lt.s32.totalorder %s19, 0
        %s146 = scalar_select %p145, %s19, 0
        %s147 = smul.addr %s146, 4
        %s148 = scalar_lea.vmem %s0, %s147
      $region16: #{tpu_custom_call.1} parent=11 // pred_fallthru
        _
    $region12: #{tpu_custom_call.1} parent=5 // pred_fallthru
      _
    %p149 = scmp.lt.s32.totalorder %s9, 4
    // Predicated region
    $region17: #{tpu_custom_call.1} parent=5 // pred_check
      %p150 = pneg %p149
    $region18: #{tpu_custom_call.1} parent=5 // pred_check_branch
      %152 = sbr.rel (%p150) target = $region20
    $region19: #{tpu_custom_call.1} parent=5 // pred_region
      // Predicated region
      $region21: #{tpu_custom_call.1} parent=19 // pred_check
        %p153 = pneg %p67
      $region22: #{tpu_custom_call.1} parent=19 // pred_check_branch
        %155 = sbr.rel (%p153) target = $region24
      $region23: #{tpu_custom_call.1} parent=19 // pred_region
        %p156 = scmp.lt.s32.totalorder %s16, 3
        %s157 = scalar_select %p156, %s16, 3
        %s158 = smul.addr %s157, 4
        %s159 = scalar_lea.vmem %s1, %s158
      $region24: #{tpu_custom_call.1} parent=19 // pred_fallthru
        _
      // Predicated region
      $region25: #{tpu_custom_call.1} parent=19 // pred_check
        %p160 = pneg %p93
      $region26: #{tpu_custom_call.1} parent=19 // pred_check_branch
        %162 = sbr.rel (%p160) target = $region28
      $region27: #{tpu_custom_call.1} parent=19 // pred_region
        %p163 = scmp.lt.s32.totalorder %s16, 3
        %s164 = scalar_select %p163, %s16, 3
        %s165 = smul.addr %s164, 2
        %s166 = smul.addr %s165, 4
        %s167 = scalar_lea.vmem %s2, %s166
      $region28: #{tpu_custom_call.1} parent=19 // pred_fallthru
        _
    $region20: #{tpu_custom_call.1} parent=5 // pred_fallthru
      _
    %p168 = scmp.le.s32.totalorder 1, %s9
    %p169 = scmp.lt.s32.totalorder %s9, 5
    %p170 = pnand %p168, %p169
    %p171 = pneg %p170
    // Predicated region
    $region29: #{tpu_custom_call.1} parent=5 // pred_check
      _
    $region30: #{tpu_custom_call.1} parent=5 // pred_check_branch
      %173 = sbr.rel (%p170) target = $region32
    $region31: #{tpu_custom_call.1} parent=5 // pred_region
      %s174 = ssub.s32 %s9, 1
      %p175 = scmp.lt.s32.totalorder %s19, 0
      %s176 = scalar_select %p175, %s19, 0
      %s177 = smul.addr %s176, 4
      %s178 = scalar_lea.vmem %s0, %s177
      %p179 = pneg %p47
      %p180 = pneg %p44
      %p181 = scmp.lt.s32.totalorder %s18, 3
      %s182 = scalar_select %p181, %s18, 3
      %s183 = smul.addr %s182, 4
      %s184 = scalar_lea.vmem %s1, %s183
      %p185 = pneg %p73
      %p186 = pneg %p70
      %p187 = scmp.lt.s32.totalorder %s18, 3
      %s188 = scalar_select %p187, %s18, 3
      %s189 = smul.addr %s188, 2
      %s190 = smul.addr %s189, 4
      %s191 = scalar_lea.vmem %s2, %s190
      %p192 = pneg %p99
      %p193 = pneg %p96
      %p194 = pneg %p127
      %p195 = pneg %p124
      %p196 = scmp.lt.s32.totalorder %s18, 3
      %s197 = scalar_select %p196, %s18, 3
      %p198 = scmp.lt.s32.totalorder %s19, 0
      %s199 = scalar_select %p198, %s19, 0
      %s200 = sadd.s32 %s199, %s197
      %s201 = smul.addr %s200, 4
      %s202 = scalar_lea.vmem %s3, %s201
      %p203 = scmp.lt.s32.totalorder %s19, 0
      %s204 = scalar_select %p203, %s19, 0
      %s205 = smul.addr %s204, 4
      %s206 = scalar_lea.vmem %s0, %s205
      %p207 = scmp.lt.s32.totalorder %s18, 3
      %s208 = scalar_select %p207, %s18, 3
      %s209 = smul.addr %s208, 4
      %s210 = scalar_lea.vmem %s1, %s209
      %p211 = scmp.lt.s32.totalorder %s18, 3
      %s212 = scalar_select %p211, %s18, 3
      %s213 = smul.addr %s212, 2
      %s214 = smul.addr %s213, 4
      %s215 = scalar_lea.vmem %s2, %s214
      %p216 = scmp.lt.s32.totalorder %s18, 3
      %s217 = scalar_select %p216, %s18, 3
      %p218 = scmp.lt.s32.totalorder %s19, 0
      %s219 = scalar_select %p218, %s19, 0
      %s220 = sadd.s32 %s219, %s217
      %s221 = smul.addr %s220, 4
      %s222 = scalar_lea.vmem %s3, %s221
      %v223 = vld [vmem:[%s206] sm:$0xf]
      %v224 = vld [vmem:[%s210] sm:$0x7]
      %v225 = vld [vmem:[%s215] sm:$0x77]
      %vm226 = vcmask 31744
      %v228 = vsel %vm226, %v224, 0
      %vm230 = vcmask 1043456
      %v232 = vsel %vm230, %v223, 0
      %234 = vmatprep.subr.mxu0 0.0
      %235 = vmatpush1.msra.mxu0 %v232
      %236 = vmatprep.subr.mxu0 0.0
      %237 = vmatpush1.msra.mxu0 0.0
      %238 = vmatprep.subr.mxu0 0.0
      %239 = vmatpush1.msra.mxu0 0.0
      %240 = vmatprep.subr.mxu0 0.0
      %241 = vmatpush1.msra.mxu0 0.0
      %242 = vmatprep.subr.mxu0 0.0
      %243 = vmatpush1.msra.mxu0 0.0
      %244 = vmatprep.subr.mxu0 0.0
      %245 = vmatpush1.msra.mxu0 0.0
      %246 = vmatprep.subr.mxu0 0.0
      %247 = vmatpush1.msra.mxu0 0.0
      %248 = vmatprep.subr.mxu0 0.0
      %249 = vmatpush1.msra.mxu0 0.0
      %250 = vmatprep.subr.mxu0 0.0
      %251 = vmatpush1.msra.mxu0 0.0
      %252 = vmatprep.subr.mxu0 0.0
      %253 = vmatpush1.msra.mxu0 0.0
      %254 = vmatprep.subr.mxu0 0.0
      %255 = vmatpush1.msra.mxu0 0.0
      %256 = vmatprep.subr.mxu0 0.0
      %257 = vmatpush1.msra.mxu0 0.0
      %258 = vmatprep.subr.mxu0 0.0
      %259 = vmatpush1.msra.mxu0 0.0
      %260 = vmatprep.subr.mxu0 0.0
      %261 = vmatpush1.msra.mxu0 0.0
      %262 = vmatprep.subr.mxu0 0.0
      %263 = vmatpush1.msra.mxu0 0.0
      %264 = vmatprep.subr.mxu0 0.0
      %265 = vmatpush1.msra.mxu0 0.0
      %266 = vmatprep.subr.mxu0 0.0
      %267 = vmatpush1.msra.mxu0 0.0
      %268 = vmatprep.subr.mxu0 0.0
      %269 = vmatpush1.msra.mxu0 0.0
      %270 = vmatprep.subr.mxu0 0.0
      %271 = vmatpush1.msra.mxu0 0.0
      %272 = vmatprep.subr.mxu0 0.0
      %273 = vmatpush1.msra.mxu0 0.0
      %274 = vmatprep.subr.mxu0 0.0
      %275 = vmatpush1.msra.mxu0 0.0
      %276 = vmatprep.subr.mxu0 0.0
      %277 = vmatpush1.msra.mxu0 0.0
      %278 = vmatprep.subr.mxu0 0.0
      %279 = vmatpush1.msra.mxu0 0.0
      %280 = vmatprep.subr.mxu0 0.0
      %281 = vmatpush1.msra.mxu0 0.0
      %282 = vmatprep.subr.mxu0 0.0
      %283 = vmatpush1.msra.mxu0 0.0
      %284 = vmatprep.subr.mxu0 0.0
      %285 = vmatpush1.msra.mxu0 0.0
      %286 = vmatprep.subr.mxu0 0.0
      %287 = vmatpush1.msra.mxu0 0.0
      %288 = vmatprep.subr.mxu0 0.0
      %289 = vmatpush1.msra.mxu0 0.0
      %290 = vmatprep.subr.mxu0 0.0
      %291 = vmatpush1.msra.mxu0 0.0
      %292 = vmatprep.subr.mxu0 0.0
      %293 = vmatpush1.msra.mxu0 0.0
      %294 = vmatprep.subr.mxu0 0.0
      %295 = vmatpush1.msra.mxu0 0.0
      %296 = vmatprep.subr.mxu0 0.0
      %297 = vmatpush1.msra.mxu0 0.0
      %298 = vmatprep.mubr.f32.mxu0 0.0
      %299 = vmatmul.mubr.f32.gmra.mrb[0].mxu0 %v228
      %v300 = vpop.f32.mrb[0].mxu0
      %v301 = vadd.f32 0.0, %v300
      %v302 = vpop.f32.mrb[0].mxu0
      %303 = vdwg.mxu0
      %v304 = vmul.f32 %v301, 16.0
      %v305 = vrcp.pop %v304
      %v306 = vmul.f32 1.0, %v305
      %v308 = vrot.slane %v306, 2
      %v310 = vmul.f32 %v301, %v308
      %v311 = vmax.f32 %v310, 0.0
      %v312 = vmin.f32 %v311, 1.0
      %v313 = vmul.f32 %v312, 2.0
      %v314 = vsub.f32 %v313, 1.0
      %v315 = vrot.slane %v306, 1
      %v317 = vmul.f32 %v301, %v315
      %v318 = vmax.f32 %v317, 0.0
      %v319 = vmin.f32 %v318, 1.0
      %v320 = vmul.f32 %v319, 2.0
      %v321 = vsub.f32 %v320, 1.0
      %v322 = vadd.f32 %v314, 1.0
      %v323 = vmul.f32 %v322, 16.0
      %v324 = vsub.f32 %v323, 1.0
      %v325 = vmul.f32 %v324, 0.5
      %v326 = vadd.f32 %v321, 1.0
      %v327 = vmul.f32 %v326, 16.0
      %v328 = vsub.f32 %v327, 1.0
      %v329 = vmul.f32 %v328, 0.5
      %v330 = vfloor.f32 %v325
      %v331 = vfloor.f32 %v329
      %v332 = vsub.f32 %v325, %v330
      %v333 = vsub.f32 %v329, %v331
      %v334 = vcvt.f32.s32.to.zero.pseudo %v330
      %v335 = vcvt.f32.s32.to.zero.pseudo %v331
      %v336 = vadd.s32 %v334, 1
      %v337 = vadd.s32 %v335, 1
      %v338 = vlaneseq
      %v339 = vshrl.u32 %v338, 7
      %v340 = vadd.s32 %v339, 8
      %v341 = vlaneseq
      %v342 = vshrl.u32 %v341, 7
      %v343 = vsub.s32 0, %v342
      %v344 = vrot.slane %v334, %v343
      %vm345 = vcmp.eq.s32.totalorder %v339, %v344
      %vm346 = vcmp.eq.s32.totalorder %v340, %v344
      %v347 = vsub.f32 1.0, %v332
      %v348 = vlaneseq
      %v349 = vshrl.u32 %v348, 7
      %v350 = vsub.s32 0, %v349
      %v351 = vrot.slane %v347, %v350
      %v352 = vsel %vm345, %v351, 0.0
      %v353 = vsel %vm346, %v351, 0.0
      %v354 = vlaneseq
      %v355 = vshrl.u32 %v354, 7
      %v356 = vsub.s32 0, %v355
      %v357 = vrot.slane %v336, %v356
      %vm358 = vcmp.eq.s32.totalorder %v339, %v357
      %vm359 = vcmp.eq.s32.totalorder %v340, %v357
      %v360 = vlaneseq
      %v361 = vshrl.u32 %v360, 7
      %v362 = vsub.s32 0, %v361
      %v363 = vrot.slane %v332, %v362
      %v364 = vsel %vm358, %v363, 0.0
      %v365 = vsel %vm359, %v363, 0.0
      %v366 = vadd.f32 %v352, %v364
      %v367 = vadd.f32 %v353, %v365
      %v368 = vlaneseq
      %v369 = vshrl.u32 %v368, 7
      %v370 = vsub.s32 1, %v369
      %v371 = vrot.slane %v335, %v370
      %vm372 = vcmp.eq.s32.totalorder %v339, %v371
      %vm373 = vcmp.eq.s32.totalorder %v340, %v371
      %v374 = vsub.f32 1.0, %v333
      %v375 = vlaneseq
      %v376 = vshrl.u32 %v375, 7
      %v377 = vsub.s32 1, %v376
      %v378 = vrot.slane %v374, %v377
      %v379 = vsel %vm372, %v378, 0.0
      %v380 = vsel %vm373, %v378, 0.0
      %v381 = vlaneseq
      %v382 = vshrl.u32 %v381, 7
      %v383 = vsub.s32 1, %v382
      %v384 = vrot.slane %v337, %v383
      %vm385 = vcmp.eq.s32.totalorder %v339, %v384
      %vm386 = vcmp.eq.s32.totalorder %v340, %v384
      %v387 = vlaneseq
      %v388 = vshrl.u32 %v387, 7
      %v389 = vsub.s32 1, %v388
      %v390 = vrot.slane %v333, %v389
      %v391 = vsel %vm385, %v390, 0.0
      %v392 = vsel %vm386, %v390, 0.0
      %v393 = vadd.f32 %v379, %v391
      %v394 = vadd.f32 %v380, %v392
      %v397 = vcombine.high %v393, %v393
      %v399 = vunpack.c.l.s4 1966171168
      %v400 = vunpack.c.0.s8 %v399
      %v401 = vlaneseq
      %v402 = vshrl.u32 %v401, 7
      %v403 = vsub.s32 %v400, %v402
      %v404 = vrot.slane %v393, %v403
      %v406 = vunpack.c.l.s4 1966171168
      %v407 = vunpack.c.0.s8 %v406
      %v408 = vlaneseq
      %v409 = vshrl.u32 %v408, 7
      %v410 = vsub.s32 %v407, %v409
      %v411 = vrot.slane %v397, %v410
      %v412 = vcombine.high %v404, %v404
      %v413 = vcombine.high %v411, %v411
      %v415 = vunpack.c.l.s4 1966171168
      %v416 = vunpack.c.0.s8 %v415
      %v417 = vlaneseq
      %v418 = vshrl.u32 %v417, 7
      %v419 = vsub.s32 %v416, %v418
      %v420 = vrot.slane %v404, %v419
      %v422 = vunpack.c.l.s4 1966171168
      %v423 = vunpack.c.0.s8 %v422
      %v424 = vlaneseq
      %v425 = vshrl.u32 %v424, 7
      %v426 = vsub.s32 %v423, %v425
      %v427 = vrot.slane %v411, %v426
      %v429 = vunpack.c.l.s4 1966171168
      %v430 = vunpack.c.0.s8 %v429
      %v431 = vlaneseq
      %v432 = vshrl.u32 %v431, 7
      %v433 = vsub.s32 %v430, %v432
      %v434 = vrot.slane %v412, %v433
      %v436 = vunpack.c.l.s4 1966171168
      %v437 = vunpack.c.0.s8 %v436
      %v438 = vlaneseq
      %v439 = vshrl.u32 %v438, 7
      %v440 = vsub.s32 %v437, %v439
      %v441 = vrot.slane %v413, %v440
      %v442 = vcombine.high %v420, %v420
      %v443 = vcombine.high %v427, %v427
      %v444 = vcombine.high %v434, %v434
      %v445 = vcombine.high %v441, %v441
      %v446 = vcombine.high %v394, %v394
      %v448 = vunpack.c.l.s4 1966171168
      %v449 = vunpack.c.0.s8 %v448
      %v450 = vlaneseq
      %v451 = vshrl.u32 %v450, 7
      %v452 = vsub.s32 %v449, %v451
      %v453 = vrot.slane %v394, %v452
      %v455 = vunpack.c.l.s4 1966171168
      %v456 = vunpack.c.0.s8 %v455
      %v457 = vlaneseq
      %v458 = vshrl.u32 %v457, 7
      %v459 = vsub.s32 %v456, %v458
      %v460 = vrot.slane %v446, %v459
      %v461 = vcombine.high %v453, %v453
      %v462 = vcombine.high %v460, %v460
      %v464 = vunpack.c.l.s4 1966171168
      %v465 = vunpack.c.0.s8 %v464
      %v466 = vlaneseq
      %v467 = vshrl.u32 %v466, 7
      %v468 = vsub.s32 %v465, %v467
      %v469 = vrot.slane %v453, %v468
      %v471 = vunpack.c.l.s4 1966171168
      %v472 = vunpack.c.0.s8 %v471
      %v473 = vlaneseq
      %v474 = vshrl.u32 %v473, 7
      %v475 = vsub.s32 %v472, %v474
      %v476 = vrot.slane %v460, %v475
      %v478 = vunpack.c.l.s4 1966171168
      %v479 = vunpack.c.0.s8 %v478
      %v480 = vlaneseq
      %v481 = vshrl.u32 %v480, 7
      %v482 = vsub.s32 %v479, %v481
      %v483 = vrot.slane %v461, %v482
      %v485 = vunpack.c.l.s4 1966171168
      %v486 = vunpack.c.0.s8 %v485
      %v487 = vlaneseq
      %v488 = vshrl.u32 %v487, 7
      %v489 = vsub.s32 %v486, %v488
      %v490 = vrot.slane %v462, %v489
      %v491 = vcombine.high %v469, %v469
      %v492 = vcombine.high %v476, %v476
      %v493 = vcombine.high %v483, %v483
      %v494 = vcombine.high %v490, %v490
      %v495 = vlaneseq
      %v496 = vshrl.u32 %v495, 7
      %v497 = vsub.s32 0, %v496
      %v498 = vrot.slane %v420, %v497
      %v499 = vlaneseq
      %v500 = vshrl.u32 %v499, 7
      %v501 = vsub.s32 0, %v500
      %v502 = vrot.slane %v434, %v501
      %v503 = vlaneseq
      %v504 = vshrl.u32 %v503, 7
      %v505 = vsub.s32 0, %v504
      %v506 = vrot.slane %v442, %v505
      %v507 = vlaneseq
      %v508 = vshrl.u32 %v507, 7
      %v509 = vsub.s32 0, %v508
      %v510 = vrot.slane %v444, %v509
      %v511 = vlaneseq
      %v512 = vshrl.u32 %v511, 7
      %v513 = vsub.s32 0, %v512
      %v514 = vrot.slane %v427, %v513
      %v515 = vlaneseq
      %v516 = vshrl.u32 %v515, 7
      %v517 = vsub.s32 0, %v516
      %v518 = vrot.slane %v441, %v517
      %v519 = vlaneseq
      %v520 = vshrl.u32 %v519, 7
      %v521 = vsub.s32 0, %v520
      %v522 = vrot.slane %v443, %v521
      %v523 = vlaneseq
      %v524 = vshrl.u32 %v523, 7
      %v525 = vsub.s32 0, %v524
      %v526 = vrot.slane %v445, %v525
      %v527 = vlaneseq
      %v528 = vshrl.u32 %v527, 7
      %v529 = vsub.s32 0, %v528
      %v530 = vrot.slane %v469, %v529
      %v531 = vlaneseq
      %v532 = vshrl.u32 %v531, 7
      %v533 = vsub.s32 0, %v532
      %v534 = vrot.slane %v483, %v533
      %v535 = vlaneseq
      %v536 = vshrl.u32 %v535, 7
      %v537 = vsub.s32 0, %v536
      %v538 = vrot.slane %v491, %v537
      %v539 = vlaneseq
      %v540 = vshrl.u32 %v539, 7
      %v541 = vsub.s32 0, %v540
      %v542 = vrot.slane %v493, %v541
      %v543 = vlaneseq
      %v544 = vshrl.u32 %v543, 7
      %v545 = vsub.s32 0, %v544
      %v546 = vrot.slane %v476, %v545
      %v547 = vlaneseq
      %v548 = vshrl.u32 %v547, 7
      %v549 = vsub.s32 0, %v548
      %v550 = vrot.slane %v490, %v549
      %v551 = vlaneseq
      %v552 = vshrl.u32 %v551, 7
      %v553 = vsub.s32 0, %v552
      %v554 = vrot.slane %v492, %v553
      %v555 = vlaneseq
      %v556 = vshrl.u32 %v555, 7
      %v557 = vsub.s32 0, %v556
      %v558 = vrot.slane %v494, %v557
      %v575 = vmul.f32 %v498, %v366
      %v576 = vmul.f32 %v498, %v367
      %v577 = vmul.f32 %v502, %v366
      %v578 = vmul.f32 %v502, %v367
      %v579 = vmul.f32 %v506, %v366
      %v580 = vmul.f32 %v506, %v367
      %v581 = vmul.f32 %v510, %v366
      %v582 = vmul.f32 %v510, %v367
      %v583 = vmul.f32 %v514, %v366
      %v584 = vmul.f32 %v514, %v367
      %v585 = vmul.f32 %v518, %v366
      %v586 = vmul.f32 %v518, %v367
      %v587 = vmul.f32 %v522, %v366
      %v588 = vmul.f32 %v522, %v367
      %v589 = vmul.f32 %v526, %v366
      %v590 = vmul.f32 %v526, %v367
      %v591 = vmul.f32 %v530, %v366
      %v592 = vmul.f32 %v530, %v367
      %v593 = vmul.f32 %v534, %v366
      %v594 = vmul.f32 %v534, %v367
      %v595 = vmul.f32 %v538, %v366
      %v596 = vmul.f32 %v538, %v367
      %v597 = vmul.f32 %v542, %v366
      %v598 = vmul.f32 %v542, %v367
      %v599 = vmul.f32 %v546, %v366
      %v600 = vmul.f32 %v546, %v367
      %v601 = vmul.f32 %v550, %v366
      %v602 = vmul.f32 %v550, %v367
      %v603 = vmul.f32 %v554, %v366
      %v604 = vmul.f32 %v554, %v367
      %v605 = vmul.f32 %v558, %v366
      %v606 = vmul.f32 %v558, %v367
      %v608 = vcombine.high %v225, %v225
      %610 = vmatprep.subr.mxu0 0.0
      %611 = vmatpush1.msra.mxu0 %v575
      %612 = vmatprep.subr.mxu0 0.0
      %613 = vmatpush1.msra.mxu0 %v576
      %614 = vmatprep.subr.mxu0 0.0
      %615 = vmatpush1.msra.mxu0 %v577
      %616 = vmatprep.subr.mxu0 0.0
      %617 = vmatpush1.msra.mxu0 %v578
      %618 = vmatprep.subr.mxu0 0.0
      %619 = vmatpush1.msra.mxu0 %v579
      %620 = vmatprep.subr.mxu0 0.0
      %621 = vmatpush1.msra.mxu0 %v580
      %622 = vmatprep.subr.mxu0 0.0
      %623 = vmatpush1.msra.mxu0 %v581
      %624 = vmatprep.subr.mxu0 0.0
      %625 = vmatpush1.msra.mxu0 %v582
      %626 = vmatprep.subr.mxu0 0.0
      %627 = vmatpush1.msra.mxu0 %v583
      %628 = vmatprep.subr.mxu0 0.0
      %629 = vmatpush1.msra.mxu0 %v584
      %630 = vmatprep.subr.mxu0 0.0
      %631 = vmatpush1.msra.mxu0 %v585
      %632 = vmatprep.subr.mxu0 0.0
      %633 = vmatpush1.msra.mxu0 %v586
      %634 = vmatprep.subr.mxu0 0.0
      %635 = vmatpush1.msra.mxu0 %v587
      %636 = vmatprep.subr.mxu0 0.0
      %637 = vmatpush1.msra.mxu0 %v588
      %638 = vmatprep.subr.mxu0 0.0
      %639 = vmatpush1.msra.mxu0 %v589
      %640 = vmatprep.subr.mxu0 0.0
      %641 = vmatpush1.msra.mxu0 %v590
      %642 = vmatprep.subr.mxu0 0.0
      %643 = vmatpush1.msra.mxu0 %v591
      %644 = vmatprep.subr.mxu0 0.0
      %645 = vmatpush1.msra.mxu0 %v592
      %646 = vmatprep.subr.mxu0 0.0
      %647 = vmatpush1.msra.mxu0 %v593
      %648 = vmatprep.subr.mxu0 0.0
      %649 = vmatpush1.msra.mxu0 %v594
      %650 = vmatprep.subr.mxu0 0.0
      %651 = vmatpush1.msra.mxu0 %v595
      %652 = vmatprep.subr.mxu0 0.0
      %653 = vmatpush1.msra.mxu0 %v596
      %654 = vmatprep.subr.mxu0 0.0
      %655 = vmatpush1.msra.mxu0 %v597
      %656 = vmatprep.subr.mxu0 0.0
      %657 = vmatpush1.msra.mxu0 %v598
      %658 = vmatprep.subr.mxu0 0.0
      %659 = vmatpush1.msra.mxu0 %v599
      %660 = vmatprep.subr.mxu0 0.0
      %661 = vmatpush1.msra.mxu0 %v600
      %662 = vmatprep.subr.mxu0 0.0
      %663 = vmatpush1.msra.mxu0 %v601
      %664 = vmatprep.subr.mxu0 0.0
      %665 = vmatpush1.msra.mxu0 %v602
      %666 = vmatprep.subr.mxu0 0.0
      %667 = vmatpush1.msra.mxu0 %v603
      %668 = vmatprep.subr.mxu0 0.0
      %669 = vmatpush1.msra.mxu0 %v604
      %670 = vmatprep.subr.mxu0 0.0
      %671 = vmatpush1.msra.mxu0 %v605
      %672 = vmatprep.subr.mxu0 0.0
      %673 = vmatpush1.msra.mxu0 %v606
      %674 = vmatprep.mubr.f32.mxu0 %v608
      %675 = vmatmul.mubr.f32.gmra.mrb[0].mxu0 %v225
      %v676 = vpop.f32.mrb[0].mxu0
      %v677 = vadd.f32 0.0, %v676
      %v678 = vpop.f32.mrb[0].mxu0
      %679 = vdwg.mxu0
      %680 = vst [vmem:[%s222] sm:$0x7] %v677
      %p681 = scmp.lt.s32.totalorder %s18, 3
      %s682 = scalar_select %p681, %s18, 3
      %p683 = scmp.lt.s32.totalorder %s19, 0
      %s684 = scalar_select %p683, %s19, 0
      %s685 = sadd.s32 %s684, %s682
      %s686 = smul.addr %s685, 4
      %s687 = scalar_lea.vmem %s3, %s686
      // Predicated region
      $region33: #{tpu_custom_call.1} parent=31 // pred_check
        %p688 = pneg %p124
      $region34: #{tpu_custom_call.1} parent=31 // pred_check_branch
        %690 = sbr.rel (%p688) target = $region36
      $region35: #{tpu_custom_call.1} parent=31 // pred_region
        _
      $region36: #{tpu_custom_call.1} parent=31 // pred_fallthru
        _
    $region32: #{tpu_custom_call.1} parent=5 // pred_fallthru
      _
    %p691 = scmp.le.s32.totalorder 2, %s9
    // Predicated region
    $region37: #{tpu_custom_call.1} parent=5 // pred_check
      %p692 = pneg %p691
    $region38: #{tpu_custom_call.1} parent=5 // pred_check_branch
      %694 = sbr.rel (%p692) target = $region40
    $region39: #{tpu_custom_call.1} parent=5 // pred_region
      %s695 = ssub.s32 %s9, 2
      // Predicated region
      $region41: #{tpu_custom_call.1} parent=39 // pred_check
        %p696 = pneg %p130
      $region42: #{tpu_custom_call.1} parent=39 // pred_check_branch
        %698 = sbr.rel (%p696) target = $region44
      $region43: #{tpu_custom_call.1} parent=39 // pred_region
        %p699 = scmp.lt.s32.totalorder %s20, 3
        %s700 = scalar_select %p699, %s20, 3
        %p701 = scmp.lt.s32.totalorder %s21, 0
        %s702 = scalar_select %p701, %s21, 0
        %s703 = sadd.s32 %s702, %s700
        %s704 = smul.addr %s703, 4
        %s705 = scalar_lea.vmem %s3, %s704
      $region44: #{tpu_custom_call.1} parent=39 // pred_fallthru
        _
    $region40: #{tpu_custom_call.1} parent=5 // pred_fallthru
      _
  $region6: #{tpu_custom_call.1} parent=0 // loop_footer
    %s13 = sadd.s32 1, %s9
  $region7: #{tpu_custom_call.1} parent=0 // loop_footer_branch
    %8 = sbr.rel target = $region3
  $region8: #{tpu_custom_call.1} parent=0 // loop_exit
    _

</llo_original>
